<compile_context>
chip_gen: v5e
topology: v5e:2x2
jax: 0.10.0
libtpu: 0.0.40
codegen_flags: <defaults>
</compile_context>

<pallas_src>
import jax
import jax.numpy as jnp
from jax.experimental import pallas as pl
from jax.experimental.pallas import tpu as pltpu


def dqn_kernel(x_ref, w1_ref, b1_ref, w2_ref, b2_ref, w3_ref, b3_ref, out_ref):
    # fc1 + ReLU  (bf16 MXU operands, f32 accumulate / elementwise)
    x = x_ref[...].astype(jnp.bfloat16)
    h1 = jnp.dot(x, w1_ref[...], preferred_element_type=jnp.float32)
    h1 = jnp.maximum(h1 + b1_ref[...], 0.0)
    # fc2 + ReLU
    h2 = jnp.dot(h1.astype(jnp.bfloat16), w2_ref[...],
                 preferred_element_type=jnp.float32)
    h2 = jnp.maximum(h2 + b2_ref[...], 0.0)
    # fc3 (no activation); output features are lane-padded to 128 by wrapper
    q = jnp.dot(h2.astype(jnp.bfloat16), w3_ref[...],
                preferred_element_type=jnp.float32)
    out_ref[...] = (q + b3_ref[...]).astype(out_ref.dtype)


def simple_dqn_forward(x, params, *, tb=128):
    """x: [B, state_dim] float32.
    params: dict of (w1,b1,w2,b2,w3,b3); weights are [in, out] (PyTorch W.T)
    in bfloat16, biases are [1, out] float32."""
    w1, b1, w2, b2, w3, b3 = (params[k] for k in ("w1", "b1", "w2", "b2", "w3", "b3"))
    B, S = x.shape
    H = w1.shape[1]
    A = w3.shape[1]

    # Lane-dense output: pad num_actions up to a multiple of 128 so stores are
    # unmasked; slice the real A columns back out after the call.
    A_p = pl.cdiv(A, 128) * 128
    if A_p != A:
        w3 = jnp.pad(w3, ((0, 0), (0, A_p - A)))
        b3 = jnp.pad(b3, ((0, 0), (0, A_p - A)))

    # Batch tile (multiple of 8); pad B up to a multiple of TB.
    TB = tb if B >= tb else pl.cdiv(B, 8) * 8
    B_p = pl.cdiv(B, TB) * TB
    if B_p != B:
        x = jnp.pad(x, ((0, B_p - B), (0, 0)))

    grid = (B_p // TB,)

    out = pl.pallas_call(
        dqn_kernel,
        out_shape=jax.ShapeDtypeStruct((B_p, A_p), jnp.float32),
        grid=grid,
        in_specs=[
            pl.BlockSpec((TB, S), lambda i: (i, 0)),   # x: walks the batch
            pl.BlockSpec((S, H), lambda i: (0, 0)),    # weights/biases stay resident
            pl.BlockSpec((1, H), lambda i: (0, 0)),
            pl.BlockSpec((H, H), lambda i: (0, 0)),
            pl.BlockSpec((1, H), lambda i: (0, 0)),
            pl.BlockSpec((H, A_p), lambda i: (0, 0)),
            pl.BlockSpec((1, A_p), lambda i: (0, 0)),
        ],
        out_specs=pl.BlockSpec((TB, A_p), lambda i: (i, 0)),
        compiler_params=pltpu.CompilerParams(
            dimension_semantics=("parallel",)),
    )(x, w1, b1, w2, b2, w3, b3)

    return out[:B, :A]


def init_params(key, state_dim, num_actions, hidden_dim=64):
    """Deterministic init mimicking nn.Linear's uniform(-1/sqrt(fan_in), ...).
    Weights stored as [in, out] (PyTorch weight.T) in bf16; biases f32."""
    ks = jax.random.split(key, 6)

    def linear(kw, kb, fan_in, fan_out):
        bound = 1.0 / jnp.sqrt(jnp.float32(fan_in))
        w = jax.random.uniform(kw, (fan_in, fan_out), jnp.float32, -bound, bound)
        b = jax.random.uniform(kb, (1, fan_out), jnp.float32, -bound, bound)
        return w.astype(jnp.bfloat16), b

    w1, b1 = linear(ks[0], ks[1], state_dim, hidden_dim)
    w2, b2 = linear(ks[2], ks[3], hidden_dim, hidden_dim)
    w3, b3 = linear(ks[4], ks[5], hidden_dim, num_actions)
    return {"w1": w1, "b1": b1, "w2": w2, "b2": b2, "w3": w3, "b3": b3}


def reference_forward(x, params):
    """Plain-JAX reference using the same bf16-operand / f32-accumulate math."""
    h = jnp.dot(x.astype(jnp.bfloat16), params["w1"],
                preferred_element_type=jnp.float32) + params["b1"]
    h = jnp.maximum(h, 0.0)
    h = jnp.dot(h.astype(jnp.bfloat16), params["w2"],
                preferred_element_type=jnp.float32) + params["b2"]
    h = jnp.maximum(h, 0.0)
    return jnp.dot(h.astype(jnp.bfloat16), params["w3"],
                   preferred_element_type=jnp.float32) + params["b3"]


if __name__ == "__main__":
    key = jax.random.PRNGKey(0)
    k_x, k_p = jax.random.split(key)

    # Small but grid-exercising shapes: batch=200 -> padded to 256 = 2 tiles of 128.
    batch = 200
    state_dim = 16
    num_actions = 4
    hidden_dim = 64

    x = jax.random.normal(k_x, (batch, state_dim), jnp.float32)
    params = init_params(k_p, state_dim, num_actions, hidden_dim)

    q_values = simple_dqn_forward(x, params)
    jax.block_until_ready(q_values)

    ref = reference_forward(x, params)
    assert q_values.shape == (batch, num_actions)
    assert jnp.allclose(q_values, ref, atol=1e-3, rtol=1e-3), (
        float(jnp.max(jnp.abs(q_values - ref))))

    print("KERNEL_OK")
</pallas_src>

<mosaic_0001>
module attributes {stable_mosaic.version = 11 : i64} {
  func.func @dqn_kernel(%arg0: i32, %arg1: memref<128x16xf32, #tpu.memory_space<vmem>>, %arg2: memref<16x64xbf16, #tpu.memory_space<vmem>>, %arg3: memref<1x64xf32, #tpu.memory_space<vmem>>, %arg4: memref<64x64xbf16, #tpu.memory_space<vmem>>, %arg5: memref<1x64xf32, #tpu.memory_space<vmem>>, %arg6: memref<64x128xbf16, #tpu.memory_space<vmem>>, %arg7: memref<1x128xf32, #tpu.memory_space<vmem>>, %arg8: memref<128x128xf32, #tpu.memory_space<vmem>>) attributes {dimension_semantics = [#tpu.dimension_semantics<parallel>], iteration_bounds = array<i64: 2>, scalar_prefetch = 0 : i64, scratch_operands = 0 : i64, tpu.core_type = #tpu.core_type<tc>, window_params = [{transform_indices = @transform_0, window_bounds = array<i64: 128, 16>}, {pipeline_mode = #tpu.pipeline_mode<synchronous>, transform_indices = @transform_1, window_bounds = array<i64: 16, 64>}, {pipeline_mode = #tpu.pipeline_mode<synchronous>, transform_indices = @transform_2, window_bounds = array<i64: 1, 64>}, {pipeline_mode = #tpu.pipeline_mode<synchronous>, transform_indices = @transform_3, window_bounds = array<i64: 64, 64>}, {pipeline_mode = #tpu.pipeline_mode<synchronous>, transform_indices = @transform_4, window_bounds = array<i64: 1, 64>}, {pipeline_mode = #tpu.pipeline_mode<synchronous>, transform_indices = @transform_5, window_bounds = array<i64: 64, 128>}, {pipeline_mode = #tpu.pipeline_mode<synchronous>, transform_indices = @transform_6, window_bounds = array<i64: 1, 128>}, {transform_indices = @transform_7, window_bounds = array<i64: 128, 128>}]} {
    %c0 = arith.constant 0 : index
    %c0_0 = arith.constant 0 : index
    %0 = vector.load %arg1[%c0, %c0_0] : memref<128x16xf32, #tpu.memory_space<vmem>>, vector<128x16xf32>
    %1 = arith.truncf %0 : vector<128x16xf32> to vector<128x16xbf16>
    %c0_1 = arith.constant 0 : index
    %c0_2 = arith.constant 0 : index
    %2 = vector.load %arg2[%c0_1, %c0_2] : memref<16x64xbf16, #tpu.memory_space<vmem>>, vector<16x64xbf16>
    %cst = arith.constant dense<0.000000e+00> : vector<128x64xf32>
    %3 = tpu.matmul %1, %2, %cst {dimension_numbers = #tpu.dot_dimension_numbers<[1], [0], [0], [1], [0, 0, 1, 1], [], []>} : vector<128x16xbf16>, vector<16x64xbf16>, vector<128x64xf32> -> vector<128x64xf32>
    %c0_3 = arith.constant 0 : index
    %c0_4 = arith.constant 0 : index
    %4 = vector.load %arg3[%c0_3, %c0_4] : memref<1x64xf32, #tpu.memory_space<vmem>>, vector<1x64xf32>
    %5 = vector.broadcast %4 : vector<1x64xf32> to vector<128x64xf32>
    %6 = arith.addf %3, %5 : vector<128x64xf32>
    %cst_5 = arith.constant 0.000000e+00 : f32
    %7 = vector.broadcast %cst_5 : f32 to vector<128x64xf32>
    %8 = arith.maximumf %6, %7 : vector<128x64xf32>
    %9 = arith.truncf %8 : vector<128x64xf32> to vector<128x64xbf16>
    %c0_6 = arith.constant 0 : index
    %c0_7 = arith.constant 0 : index
    %10 = vector.load %arg4[%c0_6, %c0_7] : memref<64x64xbf16, #tpu.memory_space<vmem>>, vector<64x64xbf16>
    %cst_8 = arith.constant dense<0.000000e+00> : vector<128x64xf32>
    %11 = tpu.matmul %9, %10, %cst_8 {dimension_numbers = #tpu.dot_dimension_numbers<[1], [0], [0], [1], [0, 0, 1, 1], [], []>} : vector<128x64xbf16>, vector<64x64xbf16>, vector<128x64xf32> -> vector<128x64xf32>
    %c0_9 = arith.constant 0 : index
    %c0_10 = arith.constant 0 : index
    %12 = vector.load %arg5[%c0_9, %c0_10] : memref<1x64xf32, #tpu.memory_space<vmem>>, vector<1x64xf32>
    %13 = vector.broadcast %12 : vector<1x64xf32> to vector<128x64xf32>
    %14 = arith.addf %11, %13 : vector<128x64xf32>
    %cst_11 = arith.constant 0.000000e+00 : f32
    %15 = vector.broadcast %cst_11 : f32 to vector<128x64xf32>
    %16 = arith.maximumf %14, %15 : vector<128x64xf32>
    %17 = arith.truncf %16 : vector<128x64xf32> to vector<128x64xbf16>
    %c0_12 = arith.constant 0 : index
    %c0_13 = arith.constant 0 : index
    %18 = vector.load %arg6[%c0_12, %c0_13] : memref<64x128xbf16, #tpu.memory_space<vmem>>, vector<64x128xbf16>
    %cst_14 = arith.constant dense<0.000000e+00> : vector<128x128xf32>
    %19 = tpu.matmul %17, %18, %cst_14 {dimension_numbers = #tpu.dot_dimension_numbers<[1], [0], [0], [1], [0, 0, 1, 1], [], []>} : vector<128x64xbf16>, vector<64x128xbf16>, vector<128x128xf32> -> vector<128x128xf32>
    %c0_15 = arith.constant 0 : index
    %c0_16 = arith.constant 0 : index
    %20 = vector.load %arg7[%c0_15, %c0_16] : memref<1x128xf32, #tpu.memory_space<vmem>>, vector<1x128xf32>
    %21 = vector.broadcast %20 : vector<1x128xf32> to vector<128x128xf32>
    %22 = arith.addf %19, %21 : vector<128x128xf32>
    %c0_17 = arith.constant 0 : index
    %c0_18 = arith.constant 0 : index
    %23 = vector.load %arg8[%c0_17, %c0_18] : memref<128x128xf32, #tpu.memory_space<vmem>>, vector<128x128xf32>
    tpu.vector_store %arg8[%c0_17, %c0_18], %22 {strides = array<i32>} : memref<128x128xf32, #tpu.memory_space<vmem>>, vector<128x128xf32>,
    return
  }
  func.func @transform_0(%arg0: i32) -> (i32, i32) {
    %c0_i32 = arith.constant 0 : i32
    %c0_i32_0 = arith.constant 0 : i32
    return %arg0, %c0_i32 : i32, i32
  }
  func.func @transform_1(%arg0: i32) -> (i32, i32) {
    %c0_i32 = arith.constant 0 : i32
    %c0_i32_0 = arith.constant 0 : i32
    %c0_i32_1 = arith.constant 0 : i32
    return %c0_i32, %c0_i32_0 : i32, i32
  }
  func.func @transform_2(%arg0: i32) -> (i32, i32) {
    %c0_i32 = arith.constant 0 : i32
    %c0_i32_0 = arith.constant 0 : i32
    %c0_i32_1 = arith.constant 0 : i32
    return %c0_i32, %c0_i32_0 : i32, i32
  }
  func.func @transform_3(%arg0: i32) -> (i32, i32) {
    %c0_i32 = arith.constant 0 : i32
    %c0_i32_0 = arith.constant 0 : i32
    %c0_i32_1 = arith.constant 0 : i32
    return %c0_i32, %c0_i32_0 : i32, i32
  }
  func.func @transform_4(%arg0: i32) -> (i32, i32) {
    %c0_i32 = arith.constant 0 : i32
    %c0_i32_0 = arith.constant 0 : i32
    %c0_i32_1 = arith.constant 0 : i32
    return %c0_i32, %c0_i32_0 : i32, i32
  }
  func.func @transform_5(%arg0: i32) -> (i32, i32) {
    %c0_i32 = arith.constant 0 : i32
    %c0_i32_0 = arith.constant 0 : i32
    %c0_i32_1 = arith.constant 0 : i32
    return %c0_i32, %c0_i32_0 : i32, i32
  }
  func.func @transform_6(%arg0: i32) -> (i32, i32) {
    %c0_i32 = arith.constant 0 : i32
    %c0_i32_0 = arith.constant 0 : i32
    %c0_i32_1 = arith.constant 0 : i32
    return %c0_i32, %c0_i32_0 : i32, i32
  }
  func.func @transform_7(%arg0: i32) -> (i32, i32) {
    %c0_i32 = arith.constant 0 : i32
    %c0_i32_0 = arith.constant 0 : i32
    return %arg0, %c0_i32 : i32, i32
  }
}

</mosaic_0001>

<llo_original>
// kernel: tpu_custom_call.1
$region0: #{tpu_custom_call.1}
  #allocation0 [shape = 'u32[]', space=smem, size = 0x4, offset = 0x4, fixed_abs, tag = 'smem constant byte address 0x4 - core index']
  #allocation1 [shape = 'u32[72,128]{1,0:T(1,128)}', space=vmem, size = 0x9000, scoped, tag = 'internal scratch']
  %s0 = inlined_call_operand.vmem [shape: f32[256,16], index: 0, kind: input, shape index: {}]
  %s1 = inlined_call_operand.vmem [shape: bf16[16,64], index: 1, kind: input, shape index: {}]
  %s2 = inlined_call_operand.vmem [shape: f32[1,64], index: 2, kind: input, shape index: {}]
  %s3 = inlined_call_operand.vmem [shape: bf16[64,64], index: 3, kind: input, shape index: {}]
  %s4 = inlined_call_operand.vmem [shape: f32[1,64], index: 4, kind: input, shape index: {}]
  %s5 = inlined_call_operand.vmem [shape: bf16[64,128], index: 5, kind: input, shape index: {}]
  %s6 = inlined_call_operand.vmem [shape: f32[1,128], index: 6, kind: input, shape index: {}]
  %s7 = inlined_call_operand.hbm [shape: f32[256,128], index: 7, kind: output, shape index: {}]
  %s8 = sld [smem:[#allocation0]]
  $region61: #{tpu_custom_call.1} parent=0
    _
  %s10 = ssub.s32 1, %s8
  %s11 = scalar_select 0, %s10, %s8
  $region1: #{tpu_custom_call.1} parent=0
    #allocation2 [shape = 'u8[131072]{0}', space=vmem, size = 0x20000, scoped, tag = 'output window, operand 0']
    #allocation3 [shape = 's32[2]{0}', space=sflag, size = 0x8, scoped, tag = 'scoped memory for tpu_custom_call.1']
    %12 = vsyncpa [#allocation3], 0
    %s13 = scalar_lea.sflag [#allocation3], 1
    %14 = vsyncpa %s13, 0
    loop: start=0, step=1, limit=4
    $region2: #{tpu_custom_call.1} parent=1 // loop_pre_header
      _
    $region3: #{tpu_custom_call.1} parent=1 // loop_header
      %s16 = sphi 0, %s20
      %p17 = scmp.ge.s32.totalorder %s16, 4
      %s26 = sphi 0, %s28
      %s29 = sphi 0, %s26
      %s30 = sphi 0, %s29
      %s46 = sphi 0, %s30
      %s50 = sphi 0, %s50
      %s52 = sphi 0, %s50
      %s53 = sphi 0, %s52
      %s67 = sphi 0, %s53
      %s71 = sphi 0, %s71
      %s73 = sphi 0, %s71
      %s74 = sphi 0, %s73
      %s88 = sphi 0, %s74
      %s92 = sphi 0, %s92
      %s94 = sphi 0, %s92
      %s95 = sphi 0, %s94
      %s109 = sphi 0, %s95
      %s113 = sphi 0, %s113
      %s115 = sphi 0, %s113
      %s116 = sphi 0, %s115
      %s130 = sphi 0, %s116
      %s134 = sphi 0, %s134
      %s136 = sphi 0, %s134
      %s137 = sphi 0, %s136
      %s151 = sphi 0, %s137
      %s155 = sphi 0, %s155
      %s157 = sphi 0, %s155
      %s158 = sphi 0, %s157
      %s172 = sphi 0, %s158
      %s178 = sphi 0, %s180
      %s181 = sphi 0, %s178
      %s182 = sphi 0, %s181
      %s198 = sphi 0, %s182
    $region4: #{tpu_custom_call.1} parent=1 // loop_header_branch
      %19 = sbr.rel (%p17) target = $region8
    $region5: #{tpu_custom_call.1} parent=1 // loop_body
      %s21 = ssub.s32 %s16, 1
      %s22 = ssub.s32 %s16, 2
      %s23 = sadd.s32 %s16, 1
      %s24 = ssub.s32 %s16, %s23
      %p25 = scmp.eq.s32.totalorder %s24, 0
      %s27 = sadd.s32 %s26, 1
      %s28 = scalar_select %p25, %s26, %s27
      %p31 = pneg %p25
      %p32 = scmp.eq.s32.totalorder %s16, 1
      %p33 = por %p31, %p32
      %p34 = scmp.ne.s32.totalorder %s26, %s29
      %p35 = scmp.eq.s32.totalorder %s16, 0
      %p36 = por %p34, %p35
      %p37 = scmp.ne.s32.totalorder %s26, %s29
      %p38 = scmp.eq.s32.totalorder %s21, 1
      %p39 = por %p37, %p38
      %p40 = scmp.ne.s32.totalorder %s29, %s30
      %p41 = scmp.eq.s32.totalorder %s21, 0
      %p42 = por %p40, %p41
      %p43 = scmp.ne.s32.totalorder %s29, %s30
      %p44 = scmp.eq.s32.totalorder %s22, 1
      %p45 = por %p43, %p44
      %p47 = scmp.ne.s32.totalorder %s30, %s46
      %p48 = scmp.eq.s32.totalorder %s22, 0
      %p49 = por %p47, %p48
      %s51 = sadd.s32 %s50, 1
      %p54 = scmp.eq.s32.totalorder %s16, 1
      %p55 = scmp.ne.s32.totalorder %s50, %s52
      %p56 = scmp.eq.s32.totalorder %s16, 0
      %p57 = por %p55, %p56
      %p58 = scmp.ne.s32.totalorder %s50, %s52
      %p59 = scmp.eq.s32.totalorder %s21, 1
      %p60 = por %p58, %p59
      %p61 = scmp.ne.s32.totalorder %s52, %s53
      %p62 = scmp.eq.s32.totalorder %s21, 0
      %p63 = por %p61, %p62
      %p64 = scmp.ne.s32.totalorder %s52, %s53
      %p65 = scmp.eq.s32.totalorder %s22, 1
      %p66 = por %p64, %p65
      %p68 = scmp.ne.s32.totalorder %s53, %s67
      %p69 = scmp.eq.s32.totalorder %s22, 0
      %p70 = por %p68, %p69
      %s72 = sadd.s32 %s71, 1
      %p75 = scmp.eq.s32.totalorder %s16, 1
      %p76 = scmp.ne.s32.totalorder %s71, %s73
      %p77 = scmp.eq.s32.totalorder %s16, 0
      %p78 = por %p76, %p77
      %p79 = scmp.ne.s32.totalorder %s71, %s73
      %p80 = scmp.eq.s32.totalorder %s21, 1
      %p81 = por %p79, %p80
      %p82 = scmp.ne.s32.totalorder %s73, %s74
      %p83 = scmp.eq.s32.totalorder %s21, 0
      %p84 = por %p82, %p83
      %p85 = scmp.ne.s32.totalorder %s73, %s74
      %p86 = scmp.eq.s32.totalorder %s22, 1
      %p87 = por %p85, %p86
      %p89 = scmp.ne.s32.totalorder %s74, %s88
      %p90 = scmp.eq.s32.totalorder %s22, 0
      %p91 = por %p89, %p90
      %s93 = sadd.s32 %s92, 1
      %p96 = scmp.eq.s32.totalorder %s16, 1
      %p97 = scmp.ne.s32.totalorder %s92, %s94
      %p98 = scmp.eq.s32.totalorder %s16, 0
      %p99 = por %p97, %p98
      %p100 = scmp.ne.s32.totalorder %s92, %s94
      %p101 = scmp.eq.s32.totalorder %s21, 1
      %p102 = por %p100, %p101
      %p103 = scmp.ne.s32.totalorder %s94, %s95
      %p104 = scmp.eq.s32.totalorder %s21, 0
      %p105 = por %p103, %p104
      %p106 = scmp.ne.s32.totalorder %s94, %s95
      %p107 = scmp.eq.s32.totalorder %s22, 1
      %p108 = por %p106, %p107
      %p110 = scmp.ne.s32.totalorder %s95, %s109
      %p111 = scmp.eq.s32.totalorder %s22, 0
      %p112 = por %p110, %p111
      %s114 = sadd.s32 %s113, 1
      %p117 = scmp.eq.s32.totalorder %s16, 1
      %p118 = scmp.ne.s32.totalorder %s113, %s115
      %p119 = scmp.eq.s32.totalorder %s16, 0
      %p120 = por %p118, %p119
      %p121 = scmp.ne.s32.totalorder %s113, %s115
      %p122 = scmp.eq.s32.totalorder %s21, 1
      %p123 = por %p121, %p122
      %p124 = scmp.ne.s32.totalorder %s115, %s116
      %p125 = scmp.eq.s32.totalorder %s21, 0
      %p126 = por %p124, %p125
      %p127 = scmp.ne.s32.totalorder %s115, %s116
      %p128 = scmp.eq.s32.totalorder %s22, 1
      %p129 = por %p127, %p128
      %p131 = scmp.ne.s32.totalorder %s116, %s130
      %p132 = scmp.eq.s32.totalorder %s22, 0
      %p133 = por %p131, %p132
      %s135 = sadd.s32 %s134, 1
      %p138 = scmp.eq.s32.totalorder %s16, 1
      %p139 = scmp.ne.s32.totalorder %s134, %s136
      %p140 = scmp.eq.s32.totalorder %s16, 0
      %p141 = por %p139, %p140
      %p142 = scmp.ne.s32.totalorder %s134, %s136
      %p143 = scmp.eq.s32.totalorder %s21, 1
      %p144 = por %p142, %p143
      %p145 = scmp.ne.s32.totalorder %s136, %s137
      %p146 = scmp.eq.s32.totalorder %s21, 0
      %p147 = por %p145, %p146
      %p148 = scmp.ne.s32.totalorder %s136, %s137
      %p149 = scmp.eq.s32.totalorder %s22, 1
      %p150 = por %p148, %p149
      %p152 = scmp.ne.s32.totalorder %s137, %s151
      %p153 = scmp.eq.s32.totalorder %s22, 0
      %p154 = por %p152, %p153
      %s156 = sadd.s32 %s155, 1
      %p159 = scmp.eq.s32.totalorder %s16, 1
      %p160 = scmp.ne.s32.totalorder %s155, %s157
      %p161 = scmp.eq.s32.totalorder %s16, 0
      %p162 = por %p160, %p161
      %p163 = scmp.ne.s32.totalorder %s155, %s157
      %p164 = scmp.eq.s32.totalorder %s21, 1
      %p165 = por %p163, %p164
      %p166 = scmp.ne.s32.totalorder %s157, %s158
      %p167 = scmp.eq.s32.totalorder %s21, 0
      %p168 = por %p166, %p167
      %p169 = scmp.ne.s32.totalorder %s157, %s158
      %p170 = scmp.eq.s32.totalorder %s22, 1
      %p171 = por %p169, %p170
      %p173 = scmp.ne.s32.totalorder %s158, %s172
      %p174 = scmp.eq.s32.totalorder %s22, 0
      %p175 = por %p173, %p174
      %s176 = ssub.s32 %s16, %s23
      %p177 = scmp.eq.s32.totalorder %s176, 0
      %s179 = sadd.s32 %s178, 1
      %s180 = scalar_select %p177, %s178, %s179
      %p183 = pneg %p177
      %p184 = scmp.eq.s32.totalorder %s16, 1
      %p185 = por %p183, %p184
      %p186 = scmp.ne.s32.totalorder %s178, %s181
      %p187 = scmp.eq.s32.totalorder %s16, 0
      %p188 = por %p186, %p187
      %p189 = scmp.ne.s32.totalorder %s178, %s181
      %p190 = scmp.eq.s32.totalorder %s21, 1
      %p191 = por %p189, %p190
      %p192 = scmp.ne.s32.totalorder %s181, %s182
      %p193 = scmp.eq.s32.totalorder %s21, 0
      %p194 = por %p192, %p193
      %p195 = scmp.ne.s32.totalorder %s181, %s182
      %p196 = scmp.eq.s32.totalorder %s22, 1
      %p197 = por %p195, %p196
      %p199 = scmp.ne.s32.totalorder %s182, %s198
      %p200 = scmp.eq.s32.totalorder %s22, 0
      %p201 = por %p199, %p200
      %p202 = scmp.le.s32.totalorder 1, %s16
      %p203 = scmp.lt.s32.totalorder %s16, 3
      %p204 = pnand %p202, %p203
      %p205 = pneg %p204
      // Predicated region
      $region9: #{tpu_custom_call.1} parent=5 // pred_check
        _
      $region10: #{tpu_custom_call.1} parent=5 // pred_check_branch
        %207 = sbr.rel (%p204) target = $region12
      $region11: #{tpu_custom_call.1} parent=5 // pred_region
        %s208 = ssub.s32 %s16, 1
        // Predicated region
        $region13: #{tpu_custom_call.1} parent=11 // pred_check
          %p209 = pneg %p63
        $region14: #{tpu_custom_call.1} parent=11 // pred_check_branch
          %211 = sbr.rel (%p209) target = $region16
        $region15: #{tpu_custom_call.1} parent=11 // pred_region
          _
        $region16: #{tpu_custom_call.1} parent=11 // pred_fallthru
          _
        // Predicated region
        $region17: #{tpu_custom_call.1} parent=11 // pred_check
          %p212 = pneg %p84
        $region18: #{tpu_custom_call.1} parent=11 // pred_check_branch
          %214 = sbr.rel (%p212) target = $region20
        $region19: #{tpu_custom_call.1} parent=11 // pred_region
          _
        $region20: #{tpu_custom_call.1} parent=11 // pred_fallthru
          _
        // Predicated region
        $region21: #{tpu_custom_call.1} parent=11 // pred_check
          %p215 = pneg %p105
        $region22: #{tpu_custom_call.1} parent=11 // pred_check_branch
          %217 = sbr.rel (%p215) target = $region24
        $region23: #{tpu_custom_call.1} parent=11 // pred_region
          _
        $region24: #{tpu_custom_call.1} parent=11 // pred_fallthru
          _
        // Predicated region
        $region25: #{tpu_custom_call.1} parent=11 // pred_check
          %p218 = pneg %p126
        $region26: #{tpu_custom_call.1} parent=11 // pred_check_branch
          %220 = sbr.rel (%p218) target = $region28
        $region27: #{tpu_custom_call.1} parent=11 // pred_region
          _
        $region28: #{tpu_custom_call.1} parent=11 // pred_fallthru
          _
        // Predicated region
        $region29: #{tpu_custom_call.1} parent=11 // pred_check
          %p221 = pneg %p147
        $region30: #{tpu_custom_call.1} parent=11 // pred_check_branch
          %223 = sbr.rel (%p221) target = $region32
        $region31: #{tpu_custom_call.1} parent=11 // pred_region
          _
        $region32: #{tpu_custom_call.1} parent=11 // pred_fallthru
          _
        // Predicated region
        $region33: #{tpu_custom_call.1} parent=11 // pred_check
          %p224 = pneg %p168
        $region34: #{tpu_custom_call.1} parent=11 // pred_check_branch
          %226 = sbr.rel (%p224) target = $region36
        $region35: #{tpu_custom_call.1} parent=11 // pred_region
          _
        $region36: #{tpu_custom_call.1} parent=11 // pred_fallthru
          _
      $region12: #{tpu_custom_call.1} parent=5 // pred_fallthru
        _
      %p227 = scmp.lt.s32.totalorder %s16, 2
      // Predicated region
      $region37: #{tpu_custom_call.1} parent=5 // pred_check
        %p228 = pneg %p227
      $region38: #{tpu_custom_call.1} parent=5 // pred_check_branch
        %230 = sbr.rel (%p228) target = $region40
      $region39: #{tpu_custom_call.1} parent=5 // pred_region
        // Predicated region
        $region41: #{tpu_custom_call.1} parent=39 // pred_check
          %p231 = pneg %p36
        $region42: #{tpu_custom_call.1} parent=39 // pred_check_branch
          %233 = sbr.rel (%p231) target = $region44
        $region43: #{tpu_custom_call.1} parent=39 // pred_region
          %s234 = smul.u32 16, %s16
          %p235 = scmp.lt.s32.totalorder %s234, 31
          %s236 = scalar_select %p235, %s234, 31
          %s237 = smul.addr %s236, 8
          %s238 = scalar_lea.vmem %s0, %s237
          %s239 = smul.u32 16, %s16
        $region44: #{tpu_custom_call.1} parent=39 // pred_fallthru
          _
      $region40: #{tpu_custom_call.1} parent=5 // pred_fallthru
        _
      %p240 = scmp.le.s32.totalorder 1, %s16
      %p241 = scmp.lt.s32.totalorder %s16, 3
      %p242 = pnand %p240, %p241
      %p243 = pneg %p242
      // Predicated region
      $region45: #{tpu_custom_call.1} parent=5 // pred_check
        _
      $region46: #{tpu_custom_call.1} parent=5 // pred_check_branch
        %245 = sbr.rel (%p242) target = $region48
      $region47: #{tpu_custom_call.1} parent=5 // pred_region
        %s246 = ssub.s32 %s16, 1
        %s247 = smul.u32 16, %s21
        %p248 = scmp.lt.s32.totalorder %s247, 31
        %s249 = scalar_select %p248, %s247, 31
        %s250 = smul.addr %s249, 8
        %s251 = scalar_lea.vmem %s0, %s250
        %p252 = pneg %p42
        %p253 = pneg %p39
        %p254 = pneg %p63
        %p255 = pneg %p60
        %p256 = pneg %p84
        %p257 = pneg %p81
        %p258 = pneg %p105
        %p259 = pneg %p102
        %p260 = pneg %p126
        %p261 = pneg %p123
        %p262 = pneg %p147
        %p263 = pneg %p144
        %p264 = pneg %p168
        %p265 = pneg %p165
        %p266 = pneg %p194
        %p267 = pneg %p191
        %s268 = sand.u32 %s181, 1
        %s269 = scalar_lea.sflag [#allocation3], %s268
        %s270 = sand.u32 %s181, 1
        %s271 = smul.addr %s270, 128
        %s272 = scalar_lea.vmem [#allocation2], %s271
        %s273 = smul.u32 16, %s21
        %p274 = scmp.lt.s32.totalorder %s273, 31
        %s275 = scalar_select %p274, %s273, 31
        %s276 = smul.addr %s275, 8
        %s277 = scalar_lea.vmem %s0, %s276
        %s278 = smul.u32 16, %s21
        %s279 = smul.u32 16, %s21
        %v281 = vld [vmem:[%s277] sm:$0xff]
        %v282 = vld [vmem:[%s277 + $0x8] sm:$0xff]
        %v283 = vld [vmem:[%s277 + $0x10] sm:$0xff]
        %v284 = vld [vmem:[%s277 + $0x18] sm:$0xff]
        %v285 = vld [vmem:[%s277 + $0x20] sm:$0xff]
        %v286 = vld [vmem:[%s277 + $0x28] sm:$0xff]
        %v287 = vld [vmem:[%s277 + $0x30] sm:$0xff]
        %v288 = vld [vmem:[%s277 + $0x38] sm:$0xff]
        %v289 = vld [vmem:[%s277 + $0x40] sm:$0xff]
        %v290 = vld [vmem:[%s277 + $0x48] sm:$0xff]
        %v291 = vld [vmem:[%s277 + $0x50] sm:$0xff]
        %v292 = vld [vmem:[%s277 + $0x58] sm:$0xff]
        %v293 = vld [vmem:[%s277 + $0x60] sm:$0xff]
        %v294 = vld [vmem:[%s277 + $0x68] sm:$0xff]
        %v295 = vld [vmem:[%s277 + $0x70] sm:$0xff]
        %v296 = vld [vmem:[%s277 + $0x78] sm:$0xff]
        %v297 = vpack.c.bf16 %v282, %v281
        %v298 = vpack.c.bf16 %v284, %v283
        %v299 = vpack.c.bf16 %v286, %v285
        %v300 = vpack.c.bf16 %v288, %v287
        %v301 = vpack.c.bf16 %v290, %v289
        %v302 = vpack.c.bf16 %v292, %v291
        %v303 = vpack.c.bf16 %v294, %v293
        %v304 = vpack.c.bf16 %v296, %v295
        %v305 = vld [vmem:[%s1] sm:$0xf]
        %v306 = vld [vmem:[%s1 + $0x4] sm:$0xf]
        %v307 = vld [vmem:[%s2] sm:$0x1]
        %v309 = vperm.slane %v307, 0
        %v313 = vunpack.c.l.b16 %v305
        %v314 = vunpack.c.l.b16 %v306
        %v315 = vpack.c.b16 %v314, %v313
        %vm317 = vcmask 130048
        %v319 = vsel %vm317, %v297, 0
        %v322 = vsel %vm317, %v298, 0
        %v325 = vsel %vm317, %v299, 0
        %v328 = vsel %vm317, %v300, 0
        %v331 = vsel %vm317, %v301, 0
        %v334 = vsel %vm317, %v302, 0
        %v337 = vsel %vm317, %v303, 0
        %v340 = vsel %vm317, %v304, 0
        %342 = vmatpush.bf16.msra.mxu0 0
        %343 = vmatpush.bf16.msra.mxu0 0
        %344 = vmatpush.bf16.msra.mxu0 0
        %345 = vmatpush.bf16.msra.mxu0 0
        %346 = vmatpush.bf16.msra.mxu0 0
        %347 = vmatpush.bf16.msra.mxu0 0
        %348 = vmatpush.bf16.msra.mxu0 0
        %349 = vmatpush.bf16.msra.mxu0 %v315
        %350 = vmatmul.bf16.gmra.mxu0 %v319
        %v351 = vpop.f32.mrf.mxu0
        %v352 = vadd.f32 %v309, %v351
        %v353 = vpop.f32.mrf.mxu0
        %v354 = vadd.f32 %v309, %v353
        %355 = vmatmul.bf16.gmra.mxu0 %v322
        %v356 = vpop.f32.mrf.mxu0
        %v357 = vadd.f32 %v309, %v356
        %v358 = vpop.f32.mrf.mxu0
        %v359 = vadd.f32 %v309, %v358
        %360 = vmatmul.bf16.gmra.mxu0 %v325
        %v361 = vpop.f32.mrf.mxu0
        %v362 = vadd.f32 %v309, %v361
        %v363 = vpop.f32.mrf.mxu0
        %v364 = vadd.f32 %v309, %v363
        %365 = vmatmul.bf16.gmra.mxu0 %v328
        %v366 = vpop.f32.mrf.mxu0
        %v367 = vadd.f32 %v309, %v366
        %v368 = vpop.f32.mrf.mxu0
        %v369 = vadd.f32 %v309, %v368
        %370 = vmatmul.bf16.gmra.mxu0 %v331
        %v371 = vpop.f32.mrf.mxu0
        %v372 = vadd.f32 %v309, %v371
        %v373 = vpop.f32.mrf.mxu0
        %v374 = vadd.f32 %v309, %v373
        %375 = vmatmul.bf16.gmra.mxu0 %v334
        %v376 = vpop.f32.mrf.mxu0
        %v377 = vadd.f32 %v309, %v376
        %v378 = vpop.f32.mrf.mxu0
        %v379 = vadd.f32 %v309, %v378
        %380 = vmatmul.bf16.gmra.mxu0 %v337
        %v381 = vpop.f32.mrf.mxu0
        %v382 = vadd.f32 %v309, %v381
        %v383 = vpop.f32.mrf.mxu0
        %v384 = vadd.f32 %v309, %v383
        %385 = vmatmul.bf16.gmra.mxu0 %v340
        %v386 = vpop.f32.mrf.mxu0
        %v387 = vadd.f32 %v309, %v386
        %v388 = vpop.f32.mrf.mxu0
        %v389 = vadd.f32 %v309, %v388
        %390 = vdwg.mxu0
        %v391 = vmax.f32 %v352, 0.0
        %v392 = vmax.f32 %v354, 0.0
        %v393 = vmax.f32 %v357, 0.0
        %v394 = vmax.f32 %v359, 0.0
        %v395 = vmax.f32 %v362, 0.0
        %v396 = vmax.f32 %v364, 0.0
        %v397 = vmax.f32 %v367, 0.0
        %v398 = vmax.f32 %v369, 0.0
        %v399 = vmax.f32 %v372, 0.0
        %v400 = vmax.f32 %v374, 0.0
        %v401 = vmax.f32 %v377, 0.0
        %v402 = vmax.f32 %v379, 0.0
        %v403 = vmax.f32 %v382, 0.0
        %v404 = vmax.f32 %v384, 0.0
        %v405 = vmax.f32 %v387, 0.0
        %v406 = vmax.f32 %v389, 0.0
        %v407 = vpack.c.bf16 %v392, %v391
        %v408 = vpack.c.bf16 %v394, %v393
        %v409 = vpack.c.bf16 %v396, %v395
        %v410 = vpack.c.bf16 %v398, %v397
        %v411 = vpack.c.bf16 %v400, %v399
        %v412 = vpack.c.bf16 %v402, %v401
        %v413 = vpack.c.bf16 %v404, %v403
        %v414 = vpack.c.bf16 %v406, %v405
        %v415 = vld [vmem:[%s3] sm:$0xf]
        %v416 = vld [vmem:[%s3 + $0x4] sm:$0xf]
        %v417 = vld [vmem:[%s3 + $0x8] sm:$0xf]
        %v418 = vld [vmem:[%s3 + $0xc] sm:$0xf]
        %v419 = vld [vmem:[%s3 + $0x10] sm:$0xf]
        %v420 = vld [vmem:[%s3 + $0x14] sm:$0xf]
        %v421 = vld [vmem:[%s3 + $0x18] sm:$0xf]
        %v422 = vld [vmem:[%s3 + $0x1c] sm:$0xf]
        %v423 = vld [vmem:[%s4] sm:$0x1]
        %v425 = vperm.slane %v423, 0
        %v435 = vunpack.c.l.b16 %v415
        %v436 = vunpack.c.l.b16 %v416
        %v437 = vunpack.c.l.b16 %v417
        %v438 = vunpack.c.l.b16 %v418
        %v439 = vunpack.c.l.b16 %v419
        %v440 = vunpack.c.l.b16 %v420
        %v441 = vunpack.c.l.b16 %v421
        %v442 = vunpack.c.l.b16 %v422
        %v443 = vpack.c.b16 %v436, %v435
        %v444 = vpack.c.b16 %v438, %v437
        %v445 = vpack.c.b16 %v440, %v439
        %v446 = vpack.c.b16 %v442, %v441
        %vm451 = vcmask 523264
        %v453 = vsel %vm451, %v407, 0
        %v456 = vsel %vm451, %v408, 0
        %v459 = vsel %vm451, %v409, 0
        %v462 = vsel %vm451, %v410, 0
        %v465 = vsel %vm451, %v411, 0
        %v468 = vsel %vm451, %v412, 0
        %v471 = vsel %vm451, %v413, 0
        %v474 = vsel %vm451, %v414, 0
        %476 = vmatpush.bf16.msra.mxu0 0
        %477 = vmatpush.bf16.msra.mxu0 0
        %478 = vmatpush.bf16.msra.mxu0 0
        %479 = vmatpush.bf16.msra.mxu0 0
        %480 = vmatpush.bf16.msra.mxu0 %v446
        %481 = vmatpush.bf16.msra.mxu0 %v445
        %482 = vmatpush.bf16.msra.mxu0 %v444
        %483 = vmatpush.bf16.msra.mxu0 %v443
        %484 = vmatmul.bf16.gmra.mxu0 %v453
        %v485 = vpop.f32.mrf.mxu0
        %v486 = vadd.f32 %v425, %v485
        %v487 = vpop.f32.mrf.mxu0
        %v488 = vadd.f32 %v425, %v487
        %489 = vmatmul.bf16.gmra.mxu0 %v456
        %v490 = vpop.f32.mrf.mxu0
        %v491 = vadd.f32 %v425, %v490
        %v492 = vpop.f32.mrf.mxu0
        %v493 = vadd.f32 %v425, %v492
        %494 = vmatmul.bf16.gmra.mxu0 %v459
        %v495 = vpop.f32.mrf.mxu0
        %v496 = vadd.f32 %v425, %v495
        %v497 = vpop.f32.mrf.mxu0
        %v498 = vadd.f32 %v425, %v497
        %499 = vmatmul.bf16.gmra.mxu0 %v462
        %v500 = vpop.f32.mrf.mxu0
        %v501 = vadd.f32 %v425, %v500
        %v502 = vpop.f32.mrf.mxu0
        %v503 = vadd.f32 %v425, %v502
        %504 = vmatmul.bf16.gmra.mxu0 %v465
        %v505 = vpop.f32.mrf.mxu0
        %v506 = vadd.f32 %v425, %v505
        %v507 = vpop.f32.mrf.mxu0
        %v508 = vadd.f32 %v425, %v507
        %509 = vmatmul.bf16.gmra.mxu0 %v468
        %v510 = vpop.f32.mrf.mxu0
        %v511 = vadd.f32 %v425, %v510
        %v512 = vpop.f32.mrf.mxu0
        %v513 = vadd.f32 %v425, %v512
        %514 = vmatmul.bf16.gmra.mxu0 %v471
        %v515 = vpop.f32.mrf.mxu0
        %v516 = vadd.f32 %v425, %v515
        %v517 = vpop.f32.mrf.mxu0
        %v518 = vadd.f32 %v425, %v517
        %519 = vmatmul.bf16.gmra.mxu0 %v474
        %v520 = vpop.f32.mrf.mxu0
        %v521 = vadd.f32 %v425, %v520
        %v522 = vpop.f32.mrf.mxu0
        %v523 = vadd.f32 %v425, %v522
        %524 = vdwg.mxu0
        %v525 = vmax.f32 %v486, 0.0
        %v526 = vmax.f32 %v488, 0.0
        %v527 = vmax.f32 %v491, 0.0
        %v528 = vmax.f32 %v493, 0.0
        %v529 = vmax.f32 %v496, 0.0
        %v530 = vmax.f32 %v498, 0.0
        %v531 = vmax.f32 %v501, 0.0
        %v532 = vmax.f32 %v503, 0.0
        %v533 = vmax.f32 %v506, 0.0
        %v534 = vmax.f32 %v508, 0.0
        %v535 = vmax.f32 %v511, 0.0
        %v536 = vmax.f32 %v513, 0.0
        %v537 = vmax.f32 %v516, 0.0
        %v538 = vmax.f32 %v518, 0.0
        %v539 = vmax.f32 %v521, 0.0
        %v540 = vmax.f32 %v523, 0.0
        %v541 = vpack.c.bf16 %v526, %v525
        %v542 = vpack.c.bf16 %v528, %v527
        %v543 = vpack.c.bf16 %v530, %v529
        %v544 = vpack.c.bf16 %v532, %v531
        %v545 = vpack.c.bf16 %v534, %v533
        %v546 = vpack.c.bf16 %v536, %v535
        %v547 = vpack.c.bf16 %v538, %v537
        %v548 = vpack.c.bf16 %v540, %v539
        %v549 = vld [vmem:[%s5] sm:$0xf]
        %v550 = vld [vmem:[%s5 + $0x4] sm:$0xf]
        %v551 = vld [vmem:[%s5 + $0x8] sm:$0xf]
        %v552 = vld [vmem:[%s5 + $0xc] sm:$0xf]
        %v553 = vld [vmem:[%s5 + $0x10] sm:$0xf]
        %v554 = vld [vmem:[%s5 + $0x14] sm:$0xf]
        %v555 = vld [vmem:[%s5 + $0x18] sm:$0xf]
        %v556 = vld [vmem:[%s5 + $0x1c] sm:$0xf]
        %v557 = vld [vmem:[%s6] sm:$0x1]
        %v559 = vperm.slane %v557, 0
        %v569 = vunpack.c.l.b16 %v549
        %v570 = vunpack.c.l.b16 %v550
        %v571 = vunpack.c.l.b16 %v551
        %v572 = vunpack.c.l.b16 %v552
        %v573 = vunpack.c.l.b16 %v553
        %v574 = vunpack.c.l.b16 %v554
        %v575 = vunpack.c.l.b16 %v555
        %v576 = vunpack.c.l.b16 %v556
        %v577 = vpack.c.b16 %v570, %v569
        %v578 = vpack.c.b16 %v572, %v571
        %v579 = vpack.c.b16 %v574, %v573
        %v580 = vpack.c.b16 %v576, %v575
        %v586 = vsel %vm451, %v541, 0
        %v589 = vsel %vm451, %v542, 0
        %v592 = vsel %vm451, %v543, 0
        %v595 = vsel %vm451, %v544, 0
        %v598 = vsel %vm451, %v545, 0
        %v601 = vsel %vm451, %v546, 0
        %v604 = vsel %vm451, %v547, 0
        %v607 = vsel %vm451, %v548, 0
        %609 = vmatpush.bf16.msra.mxu0 0
        %610 = vmatpush.bf16.msra.mxu0 0
        %611 = vmatpush.bf16.msra.mxu0 0
        %612 = vmatpush.bf16.msra.mxu0 0
        %613 = vmatpush.bf16.msra.mxu0 %v580
        %614 = vmatpush.bf16.msra.mxu0 %v579
        %615 = vmatpush.bf16.msra.mxu0 %v578
        %616 = vmatpush.bf16.msra.mxu0 %v577
        %617 = vmatmul.bf16.gmra.mxu0 %v586
        %v618 = vpop.f32.mrf.mxu0
        %v619 = vadd.f32 %v559, %v618
        %v620 = vpop.f32.mrf.mxu0
        %v621 = vadd.f32 %v559, %v620
        %622 = vmatmul.bf16.gmra.mxu0 %v589
        %v623 = vpop.f32.mrf.mxu0
        %v624 = vadd.f32 %v559, %v623
        %v625 = vpop.f32.mrf.mxu0
        %v626 = vadd.f32 %v559, %v625
        %627 = vmatmul.bf16.gmra.mxu0 %v592
        %v628 = vpop.f32.mrf.mxu0
        %v629 = vadd.f32 %v559, %v628
        %v630 = vpop.f32.mrf.mxu0
        %v631 = vadd.f32 %v559, %v630
        %632 = vmatmul.bf16.gmra.mxu0 %v595
        %v633 = vpop.f32.mrf.mxu0
        %v634 = vadd.f32 %v559, %v633
        %v635 = vpop.f32.mrf.mxu0
        %v636 = vadd.f32 %v559, %v635
        %637 = vmatmul.bf16.gmra.mxu0 %v598
        %v638 = vpop.f32.mrf.mxu0
        %v639 = vadd.f32 %v559, %v638
        %v640 = vpop.f32.mrf.mxu0
        %v641 = vadd.f32 %v559, %v640
        %642 = vmatmul.bf16.gmra.mxu0 %v601
        %v643 = vpop.f32.mrf.mxu0
        %v644 = vadd.f32 %v559, %v643
        %v645 = vpop.f32.mrf.mxu0
        %v646 = vadd.f32 %v559, %v645
        %647 = vmatmul.bf16.gmra.mxu0 %v604
        %v648 = vpop.f32.mrf.mxu0
        %v649 = vadd.f32 %v559, %v648
        %v650 = vpop.f32.mrf.mxu0
        %v651 = vadd.f32 %v559, %v650
        %652 = vmatmul.bf16.gmra.mxu0 %v607
        %v653 = vpop.f32.mrf.mxu0
        %v654 = vadd.f32 %v559, %v653
        %v655 = vpop.f32.mrf.mxu0
        %v656 = vadd.f32 %v559, %v655
        %657 = vdwg.mxu0
        %658 = vst [vmem:[%s272] sm:$0xff] %v619
        %659 = vst [vmem:[%s272 + $0x8] sm:$0xff] %v621
        %660 = vst [vmem:[%s272 + $0x10] sm:$0xff] %v624
        %661 = vst [vmem:[%s272 + $0x18] sm:$0xff] %v626
        %662 = vst [vmem:[%s272 + $0x20] sm:$0xff] %v629
        %663 = vst [vmem:[%s272 + $0x28] sm:$0xff] %v631
        %664 = vst [vmem:[%s272 + $0x30] sm:$0xff] %v634
        %665 = vst [vmem:[%s272 + $0x38] sm:$0xff] %v636
        %666 = vst [vmem:[%s272 + $0x40] sm:$0xff] %v639
        %667 = vst [vmem:[%s272 + $0x48] sm:$0xff] %v641
        %668 = vst [vmem:[%s272 + $0x50] sm:$0xff] %v644
        %669 = vst [vmem:[%s272 + $0x58] sm:$0xff] %v646
        %670 = vst [vmem:[%s272 + $0x60] sm:$0xff] %v649
        %671 = vst [vmem:[%s272 + $0x68] sm:$0xff] %v651
        %672 = vst [vmem:[%s272 + $0x70] sm:$0xff] %v654
        %673 = vst [vmem:[%s272 + $0x78] sm:$0xff] %v656
        %s674 = sand.u32 %s181, 1
        %s675 = scalar_lea.sflag [#allocation3], %s674
        %s676 = sand.u32 %s181, 1
        %s677 = smul.addr %s676, 128
        %s678 = scalar_lea.vmem [#allocation2], %s677
        // Predicated region
        $region49: #{tpu_custom_call.1} parent=47 // pred_check
          %p679 = pneg %p191
        $region50: #{tpu_custom_call.1} parent=47 // pred_check_branch
          %681 = sbr.rel (%p679) target = $region52
        $region51: #{tpu_custom_call.1} parent=47 // pred_region
          %s682 = smul.u32 16, %s21
          %684 = vsyncadd %s675, 0
          %s685 = smul.addr %s682, 8
          %s686 = scalar_lea.hbm %s7, %s685
          %s687 = sshll.u32 %s678, 4
          %s688 = int_to_ptr.vmem [resolvable:$true] %s687
          %s689 = sshll.u32 %s686, 4
          %s690 = int_to_ptr.hbm [resolvable:$true] %s689
          %695 = dma.vmem_to_hbm [thread:$0]  %s688, 2048, %s690, %s675, 128, 128, 8
        $region52: #{tpu_custom_call.1} parent=47 // pred_fallthru
          _
      $region48: #{tpu_custom_call.1} parent=5 // pred_fallthru
        _
      %p696 = scmp.le.s32.totalorder 2, %s16
      // Predicated region
      $region53: #{tpu_custom_call.1} parent=5 // pred_check
        %p697 = pneg %p696
      $region54: #{tpu_custom_call.1} parent=5 // pred_check_branch
        %699 = sbr.rel (%p697) target = $region56
      $region55: #{tpu_custom_call.1} parent=5 // pred_region
        %s700 = ssub.s32 %s16, 2
        // Predicated region
        $region57: #{tpu_custom_call.1} parent=55 // pred_check
          %p701 = pneg %p197
        $region58: #{tpu_custom_call.1} parent=55 // pred_check_branch
          %703 = sbr.rel (%p701) target = $region60
        $region59: #{tpu_custom_call.1} parent=55 // pred_region
          %s704 = sand.u32 %s182, 1
          %s705 = scalar_lea.sflag [#allocation3], %s704
          %s706 = sand.u32 %s182, 1
          %s707 = smul.addr %s706, 128
          %s708 = scalar_lea.vmem [#allocation2], %s707
          %710 = dma.done %s705, 2048
        $region60: #{tpu_custom_call.1} parent=55 // pred_fallthru
          _
      $region56: #{tpu_custom_call.1} parent=5 // pred_fallthru
        _
    $region6: #{tpu_custom_call.1} parent=1 // loop_footer
      %s20 = sadd.s32 1, %s16
    $region7: #{tpu_custom_call.1} parent=1 // loop_footer_branch
      %15 = sbr.rel target = $region3
    $region8: #{tpu_custom_call.1} parent=1 // loop_exit
      _
    %711 = vsyncpa [#allocation3], 1
    %s712 = scalar_lea.sflag [#allocation3], 1
    %713 = vsyncpa %s712, 1

</llo_original>
